<compile_context>
chip_gen: v7x
topology: tpu7x:2x2x1
jax: 0.10.0
libtpu: 0.0.40
codegen_flags: <defaults>
</compile_context>

<pallas_src>
import math
import functools

import jax
import jax.numpy as jnp
from jax.experimental import pallas as pl
from jax.experimental.pallas import tpu as pltpu


# ----------------------------------------------------------------------------
# Generation-aware VMEM limit and single-buffering probe
# ----------------------------------------------------------------------------
@functools.lru_cache(maxsize=None)
def _vmem_limit_bytes():
    try:
        cap = getattr(pltpu.get_tpu_info(), "vmem_capacity_bytes", None)
        if cap:
            return int(cap) * 3 // 4           # 96 MiB on v5e/v6e, 48 MiB on v7x
    except Exception:
        pass
    return 48 * 1024 * 1024                     # conservative fallback


@functools.lru_cache(maxsize=None)
def _single_buffer_ok():
    """Probe whether pipeline_mode=pl.Buffered(1) is supported on this backend."""
    try:
        def k(x_ref, w_ref, o_ref):
            o_ref[...] = x_ref[...] + w_ref[...]
        spec = pl.BlockSpec((8, 128), lambda i: (0, 0))
        wspec = pl.BlockSpec((8, 128), lambda i: (0, 0),
                             pipeline_mode=pl.Buffered(1))
        x = jnp.zeros((8, 128), jnp.float32)
        out = pl.pallas_call(
            k, out_shape=jax.ShapeDtypeStruct((8, 128), jnp.float32),
            grid=(1,), in_specs=[spec, wspec], out_specs=spec)(x, x)
        jax.block_until_ready(out)
        return True
    except Exception:
        return False


def _resident_spec(shape):
    """BlockSpec for an operand that stays VMEM-resident (constant index_map);
    single-buffered when supported so it is not held twice in VMEM."""
    index_map = lambda i: tuple(0 for _ in shape)
    if _single_buffer_ok():
        return pl.BlockSpec(shape, index_map, pipeline_mode=pl.Buffered(1))
    return pl.BlockSpec(shape, index_map)


# ----------------------------------------------------------------------------
# Kernel 1: dense linear layer  y = x @ w + b, row-tiled over N = B*S.
#   w is pre-transposed to (D_in, D_out) and pre-cast to bf16.
#   With num_splits > 1 the (tm, D_out) result is split column-wise into
#   several lane-dense outputs (used for the fused QKV projection).
# ----------------------------------------------------------------------------
def _linear_kernel(x_ref, w_ref, b_ref, *o_refs):
    x = x_ref[...].astype(jnp.bfloat16)                              # (tm, D_in)
    y = jnp.dot(x, w_ref[...], preferred_element_type=jnp.float32)   # MXU, f32 acc
    y = y + b_ref[...]                                               # (1, D_out) f32
    d = y.shape[-1] // len(o_refs)
    for idx, o_ref in enumerate(o_refs):
        o_ref[...] = y[:, idx * d:(idx + 1) * d].astype(o_ref.dtype)


def pallas_linear(x2d, w_t, b, out_dtype, *, num_splits=1, tm=1024):
    """x2d: (N, D_in); w_t: (D_in, D_out) bf16; b: (D_out,) f32.
    Returns (N, D_out//num_splits) per split (single array if num_splits == 1)."""
    n, d_in = x2d.shape
    d_out = w_t.shape[1]
    d_split = d_out // num_splits
    tm = min(tm, n)

    out_shape = tuple(jax.ShapeDtypeStruct((n, d_split), out_dtype)
                      for _ in range(num_splits))
    out_specs = tuple(pl.BlockSpec((tm, d_split), lambda i: (i, 0))
                      for _ in range(num_splits))

    outs = pl.pallas_call(
        _linear_kernel,
        out_shape=out_shape,
        grid=(pl.cdiv(n, tm),),
        in_specs=[
            pl.BlockSpec((tm, d_in), lambda i: (i, 0)),   # streamed / pipelined rows
            _resident_spec((d_in, d_out)),                # weight: resident, 1-buffered
            _resident_spec((1, d_out)),                   # bias:   resident, 1-buffered
        ],
        out_specs=out_specs,
        compiler_params=pltpu.CompilerParams(
            dimension_semantics=("parallel",),
            vmem_limit_bytes=_vmem_limit_bytes()),
    )(x2d, w_t, b.reshape(1, d_out))
    return outs if num_splits > 1 else outs[0]


# ----------------------------------------------------------------------------
# Kernel 2: multi-head attention with online softmax (flash-style KV tiling).
#   grid = (B, head_groups, kv_blocks); semantics ("parallel","parallel","arbitrary")
# ----------------------------------------------------------------------------
def _head_group(h, d_k):
    """Heads per group so the group's lane width is 128-aligned when possible."""
    if d_k % 128 == 0:
        return 1
    if 128 % d_k == 0:
        per = 128 // d_k
        if per < h and h % per == 0 and (per * d_k) % 128 == 0:
            return per
    return h          # one group -> group width == d_model (full last dim)


def _choose_tkv(S_k, with_attn, tkv):
    if with_attn:
        return S_k                     # full-row denominator needed for the probs
    if tkv is not None:
        return tkv
    if S_k <= 512:
        return S_k
    for t in (512, 256, 128):
        if S_k % t == 0:
            return t
    return S_k


def _mha_kernel(*refs, hpg, d_k, has_mask, with_attn):
    i = 0
    q_ref, k_ref, v_ref = refs[0], refs[1], refs[2]
    i = 3
    bias_ref = None
    if has_mask:
        bias_ref = refs[i]; i += 1
    o_ref = refs[i]; i += 1
    p_ref = None
    if with_attn:
        p_ref = refs[i]; i += 1
    m_scr, l_scr, acc_scr = refs[i], refs[i + 1], refs[i + 2]

    kv = pl.program_id(2)
    last_kv = pl.num_programs(2) - 1

    @pl.when(kv == 0)
    def _():
        m_scr[...] = jnp.full(m_scr.shape, -jnp.inf, m_scr.dtype)
        l_scr[...] = jnp.zeros(l_scr.shape, l_scr.dtype)
        acc_scr[...] = jnp.zeros(acc_scr.shape, acc_scr.dtype)

    if has_mask:
        bias = bias_ref[0].astype(jnp.float32)            # (S_q, tkv) additive bias

    for head in range(hpg):                               # static unroll, hpg small
        col = head * d_k
        qh = q_ref[0, :, pl.ds(col, d_k)]                 # (S_q, d_k) bf16, pre-scaled
        kh = k_ref[0, :, pl.ds(col, d_k)]                 # (tkv, d_k) bf16
        vh = v_ref[0, :, pl.ds(col, d_k)]                 # (tkv, d_k) bf16

        # scores = q @ k^T ; the 1/sqrt(d_k) scale is baked into the Q projection.
        s = jax.lax.dot_general(qh, kh, (((1,), (1,)), ((), ())),
                                preferred_element_type=jnp.float32)  # (S_q, tkv)
        if has_mask:
            s = s + bias

        m_prev = m_scr[head]                              # (S_q, 1)
        m_new = jnp.maximum(m_prev, jnp.max(s, axis=-1, keepdims=True))
        alpha = jnp.exp(m_prev - m_new)                   # rescale of previous state
        e = jnp.exp(s - m_new)                            # (S_q, tkv) f32
        l_new = alpha * l_scr[head] + jnp.sum(e, axis=-1, keepdims=True)

        pv = jnp.dot(e.astype(jnp.bfloat16), vh,
                     preferred_element_type=jnp.float32)  # (S_q, d_k)
        acc_scr[:, pl.ds(col, d_k)] = alpha * acc_scr[:, pl.ds(col, d_k)] + pv

        m_scr[head] = m_new
        l_scr[head] = l_new

        if with_attn:
            # Wrapper forces a single KV block here, so l_new is the full row sum;
            # probabilities stored per head-group in bf16.
            p_ref[0, head] = (e * pl.reciprocal(l_new, approx=True)).astype(p_ref.dtype)

    @pl.when(kv == last_kv)
    def _():
        for head in range(hpg):
            col = head * d_k
            inv = pl.reciprocal(l_scr[head], approx=True)            # EUP, ~free
            o_ref[0, :, pl.ds(col, d_k)] = (
                acc_scr[:, pl.ds(col, d_k)] * inv).astype(o_ref.dtype)


def pallas_attention(q, k, v, mask, *, h, d_k, with_attn, tkv=None):
    """q/k/v: (B, S, D) bf16 (Q pre-scaled by 1/sqrt(d_k) via its projection).
    mask: None or (1|B, S_q, S_k) with 0 = masked out.
    Returns (ctx (B, S_q, D) bf16, attn (B, h, S_q, S_k) bf16 or None)."""
    B, S_q, D = q.shape
    S_k = k.shape[1]
    assert v.shape[1] == S_k
    has_mask = mask is not None

    hpg = _head_group(h, d_k)                 # heads per group (lane-aligned width)
    G = h // hpg
    gw = hpg * d_k                            # group lane width (128-mult or == D)
    tkv = _choose_tkv(S_k, with_attn, tkv)
    assert S_k % tkv == 0, "KV tile must divide the key length"
    num_kv = S_k // tkv

    kernel = functools.partial(_mha_kernel, hpg=hpg, d_k=d_k,
                               has_mask=has_mask, with_attn=with_attn)

    in_specs = [
        pl.BlockSpec((1, S_q, gw), lambda b, g, kv: (b, 0, g)),    # Q (resident per b,g)
        pl.BlockSpec((1, tkv, gw), lambda b, g, kv: (b, kv, g)),   # K kv-tile
        pl.BlockSpec((1, tkv, gw), lambda b, g, kv: (b, kv, g)),   # V kv-tile
    ]
    inputs = [q, k, v]
    if has_mask:
        # Precompute additive bias once (bf16): no per-step compare/select, half DMA.
        bias = jnp.where(mask == 0, jnp.float32(-1e9),
                         jnp.float32(0.0)).astype(jnp.bfloat16)
        if mask.shape[0] == 1:
            # batch-invariant mask: constant batch index -> DMA'd once, stays resident
            in_specs.append(pl.BlockSpec((1, S_q, tkv), lambda b, g, kv: (0, 0, kv)))
        else:
            in_specs.append(pl.BlockSpec((1, S_q, tkv), lambda b, g, kv: (b, 0, kv)))
        inputs.append(bias)

    out_shape = [jax.ShapeDtypeStruct((B, S_q, D), jnp.bfloat16)]
    out_specs = [pl.BlockSpec((1, S_q, gw), lambda b, g, kv: (b, 0, g))]
    if with_attn:
        out_shape.append(jax.ShapeDtypeStruct((B, h, S_q, S_k), jnp.bfloat16))
        out_specs.append(pl.BlockSpec((1, hpg, S_q, S_k),
                                      lambda b, g, kv: (b, g, 0, 0)))

    scratch_shapes = [
        pltpu.VMEM((hpg, S_q, 1), jnp.float32),   # running max per head
        pltpu.VMEM((hpg, S_q, 1), jnp.float32),   # running denom per head
        pltpu.VMEM((S_q, gw), jnp.float32),       # context accumulator (lane-dense)
    ]

    outs = pl.pallas_call(
        kernel,
        out_shape=tuple(out_shape),
        grid=(B, G, num_kv),
        in_specs=in_specs,
        out_specs=tuple(out_specs),
        scratch_shapes=scratch_shapes,
        compiler_params=pltpu.CompilerParams(
            dimension_semantics=("parallel", "parallel", "arbitrary"),
            vmem_limit_bytes=_vmem_limit_bytes()),
    )(*inputs)

    if with_attn:
        return outs[0], outs[1]
    return outs[0], None


# ----------------------------------------------------------------------------
# One-time parameter preparation: transpose weights to (D_in, D_out), cast to
# bf16, bake the 1/sqrt(d_k) scale into W_q/b_q, build the fused QKV weight.
# ----------------------------------------------------------------------------
def prepare_params(raw, *, h, d_model):
    d_k = d_model // h
    inv = 1.0 / math.sqrt(d_k)
    wq = (raw["w_q"] * inv).T
    wk = raw["w_k"].T
    wv = raw["w_v"].T
    bq = raw["b_q"] * inv
    return {
        "h": h,
        "d_model": d_model,
        "w_q": wq.astype(jnp.bfloat16),
        "w_k": wk.astype(jnp.bfloat16),
        "w_v": wv.astype(jnp.bfloat16),
        "w_qkv": jnp.concatenate([wq, wk, wv], axis=1).astype(jnp.bfloat16),
        "b_q": bq.astype(jnp.float32),
        "b_k": raw["b_k"].astype(jnp.float32),
        "b_v": raw["b_v"].astype(jnp.float32),
        "b_qkv": jnp.concatenate([bq, raw["b_k"], raw["b_v"]]).astype(jnp.float32),
        "w_o": raw["w_o"].T.astype(jnp.bfloat16),
        "b_o": raw["b_o"].astype(jnp.float32),
    }


# ----------------------------------------------------------------------------
# MultiHeadedAttention forward (glue in plain JAX, matmuls in Pallas)
# ----------------------------------------------------------------------------
def multi_headed_attention(params, query, key, value, mask=None,
                           with_attn=False, attn_tkv=None):
    """query/key/value: (B, S, d_model). mask: None or (1|B, S, S) (0 = masked).
    Returns (output (B, S, d_model), attn).  The PyTorch module returns the
    attention probabilities as well — pass with_attn=True for that parity; the
    default with_attn=False skips materializing the (B,h,S,S) matrix (big
    VMEM / HBM saving) and returns attn=None."""
    h = params["h"]
    d_model = params["d_model"]
    d_k = d_model // h
    B, S, _ = query.shape
    n = B * S

    if (query is key) and (key is value):
        # Self-attention fast path: one fused (D, 3D) projection; x read from HBM
        # once; q/k/v emitted as three lane-dense (N, D) outputs.
        q2, k2, v2 = pallas_linear(query.reshape(n, d_model), params["w_qkv"],
                                   params["b_qkv"], jnp.bfloat16, num_splits=3)
        q3 = q2.reshape(B, S, d_model)
        k3 = k2.reshape(B, S, d_model)
        v3 = v2.reshape(B, S, d_model)
    else:
        def project(x, w, b):
            y = pallas_linear(x.reshape(-1, d_model), w, b, jnp.bfloat16)
            return y.reshape(x.shape[0], x.shape[1], d_model)
        q3 = project(query, params["w_q"], params["b_q"])
        k3 = project(key, params["w_k"], params["b_k"])
        v3 = project(value, params["w_v"], params["b_v"])

    ctx, attn = pallas_attention(q3, k3, v3, mask, h=h, d_k=d_k,
                                 with_attn=with_attn, tkv=attn_tkv)

    out = pallas_linear(ctx.reshape(n, d_model), params["w_o"], params["b_o"],
                        query.dtype)
    return out.reshape(B, S, d_model), attn


# ----------------------------------------------------------------------------
# Pure-JAX f32 reference (mirrors the PyTorch module) for validation
# ----------------------------------------------------------------------------
def reference_mha(raw, query, key, value, mask=None, *, h):
    d_model = query.shape[-1]
    d_k = d_model // h
    B, S, _ = query.shape

    def lin(x, w, b):
        return x @ w.T + b

    def heads(x):
        return x.reshape(B, -1, h, d_k).transpose(0, 2, 1, 3)

    q = heads(lin(query, raw["w_q"], raw["b_q"]))
    k = heads(lin(key, raw["w_k"], raw["b_k"]))
    v = heads(lin(value, raw["w_v"], raw["b_v"]))

    scores = jnp.einsum("bhqd,bhkd->bhqk", q, k) / math.sqrt(d_k)
    if mask is not None:
        scores = jnp.where(mask[:, None, :, :] == 0, -1e9, scores)
    p = jax.nn.softmax(scores, axis=-1)
    ctx = jnp.einsum("bhqk,bhkd->bhqd", p, v)
    ctx = ctx.transpose(0, 2, 1, 3).reshape(B, S, d_model)
    return lin(ctx, raw["w_o"], raw["b_o"]), p


if __name__ == "__main__":
    # Small shapes: batch=2, seq=8, d_model=32, heads=4 (d_k=8)
    B, S, D, H = 2, 8, 32, 4

    rng = jax.random.PRNGKey(0)
    ks = jax.random.split(rng, 12)
    scale = 1.0 / math.sqrt(D)
    raw = {
        "w_q": jax.random.uniform(ks[0], (D, D), jnp.float32, -scale, scale),
        "b_q": jax.random.uniform(ks[1], (D,), jnp.float32, -scale, scale),
        "w_k": jax.random.uniform(ks[2], (D, D), jnp.float32, -scale, scale),
        "b_k": jax.random.uniform(ks[3], (D,), jnp.float32, -scale, scale),
        "w_v": jax.random.uniform(ks[4], (D, D), jnp.float32, -scale, scale),
        "b_v": jax.random.uniform(ks[5], (D,), jnp.float32, -scale, scale),
        "w_o": jax.random.uniform(ks[6], (D, D), jnp.float32, -scale, scale),
        "b_o": jax.random.uniform(ks[7], (D,), jnp.float32, -scale, scale),
    }
    params = prepare_params(raw, h=H, d_model=D)

    x = jax.random.normal(ks[8], (B, S, D), jnp.float32)
    q_in = jax.random.normal(ks[9], (B, S, D), jnp.float32)
    kv_in = jax.random.normal(ks[10], (B, S, D), jnp.float32)
    mask = jnp.tril(jnp.ones((S, S), jnp.float32))[None].repeat(B, axis=0)

    # --- Test 1: self-attention + causal mask, probabilities requested (module parity) ---
    out1, attn1 = multi_headed_attention(params, x, x, x, mask=mask, with_attn=True)
    out1 = jax.block_until_ready(out1)
    attn1 = jax.block_until_ready(attn1)
    ref_out1, ref_attn1 = reference_mha(raw, x, x, x, mask=mask, h=H)
    assert out1.shape == (B, S, D)
    assert attn1.shape == (B, H, S, S)
    # tolerances relaxed for bf16 MXU inputs, bf16 prob storage + approx reciprocal
    assert jnp.allclose(out1, ref_out1, atol=5e-2, rtol=5e-2)
    assert jnp.allclose(attn1.astype(jnp.float32), ref_attn1, atol=5e-2, rtol=5e-2)

    # --- Test 2: cross-attention, no mask, probabilities requested ---
    out2, attn2 = multi_headed_attention(params, q_in, kv_in, kv_in, mask=None,
                                         with_attn=True)
    out2 = jax.block_until_ready(out2)
    attn2 = jax.block_until_ready(attn2)
    ref_out2, ref_attn2 = reference_mha(raw, q_in, kv_in, kv_in, mask=None, h=H)
    assert jnp.allclose(out2, ref_out2, atol=5e-2, rtol=5e-2)
    assert jnp.allclose(attn2.astype(jnp.float32), ref_attn2, atol=5e-2, rtol=5e-2)

    # --- Test 3: flash KV-tiled path (default with_attn=False), batch-invariant mask ---
    B3, S3 = 1, 256
    x3 = jax.random.normal(ks[11], (B3, S3, D), jnp.float32)
    mask3 = jnp.tril(jnp.ones((S3, S3), jnp.float32))[None]      # (1, S3, S3)
    out3, attn3 = multi_headed_attention(params, x3, x3, x3, mask=mask3,
                                         attn_tkv=128)           # 2 KV blocks
    out3 = jax.block_until_ready(out3)
    ref_out3, _ = reference_mha(raw, x3, x3, x3, mask=mask3, h=H)
    assert attn3 is None
    assert jnp.allclose(out3, ref_out3, atol=5e-2, rtol=5e-2)

    print("KERNEL_OK")
</pallas_src>

<mosaic_0001>
module attributes {stable_mosaic.version = 11 : i64} {
  func.func @k(%arg0: i32, %arg1: memref<8x128xf32, #tpu.memory_space<vmem>>, %arg2: memref<8x128xf32, #tpu.memory_space<vmem>>, %arg3: memref<8x128xf32, #tpu.memory_space<vmem>>) attributes {dimension_semantics = [#tpu.dimension_semantics<arbitrary>], iteration_bounds = array<i64: 1>, scalar_prefetch = 0 : i64, scratch_operands = 0 : i64, tpu.core_type = #tpu.core_type<tc>, window_params = [{pipeline_mode = #tpu.pipeline_mode<synchronous>, transform_indices = @transform_0, window_bounds = array<i64: 8, 128>}, {pipeline_mode = #tpu.pipeline_mode<synchronous>, transform_indices = @transform_1, window_bounds = array<i64: 8, 128>}, {pipeline_mode = #tpu.pipeline_mode<synchronous>, transform_indices = @transform_2, window_bounds = array<i64: 8, 128>}]} {
    %c0 = arith.constant 0 : index
    %c0_0 = arith.constant 0 : index
    %0 = vector.load %arg1[%c0, %c0_0] : memref<8x128xf32, #tpu.memory_space<vmem>>, vector<8x128xf32>
    %c0_1 = arith.constant 0 : index
    %c0_2 = arith.constant 0 : index
    %1 = vector.load %arg2[%c0_1, %c0_2] : memref<8x128xf32, #tpu.memory_space<vmem>>, vector<8x128xf32>
    %2 = arith.addf %0, %1 : vector<8x128xf32>
    %c0_3 = arith.constant 0 : index
    %c0_4 = arith.constant 0 : index
    %3 = vector.load %arg3[%c0_3, %c0_4] : memref<8x128xf32, #tpu.memory_space<vmem>>, vector<8x128xf32>
    tpu.vector_store %arg3[%c0_3, %c0_4], %2 {strides = array<i32>} : memref<8x128xf32, #tpu.memory_space<vmem>>, vector<8x128xf32>,
    return
  }
  func.func @transform_0(%arg0: i32) -> (i32, i32) {
    %c0_i32 = arith.constant 0 : i32
    %c0_i32_0 = arith.constant 0 : i32
    %c0_i32_1 = arith.constant 0 : i32
    return %c0_i32, %c0_i32_0 : i32, i32
  }
  func.func @transform_1(%arg0: i32) -> (i32, i32) {
    %c0_i32 = arith.constant 0 : i32
    %c0_i32_0 = arith.constant 0 : i32
    %c0_i32_1 = arith.constant 0 : i32
    return %c0_i32, %c0_i32_0 : i32, i32
  }
  func.func @transform_2(%arg0: i32) -> (i32, i32) {
    %c0_i32 = arith.constant 0 : i32
    %c0_i32_0 = arith.constant 0 : i32
    %c0_i32_1 = arith.constant 0 : i32
    return %c0_i32, %c0_i32_0 : i32, i32
  }
}

module attributes {stable_mosaic.version = 11 : i64} {
  func.func @_linear_kernel(%arg0: i32, %arg1: memref<16x32xf32, #tpu.memory_space<vmem>>, %arg2: memref<32x96xbf16, #tpu.memory_space<vmem>>, %arg3: memref<1x96xf32, #tpu.memory_space<vmem>>, %arg4: memref<16x32xbf16, #tpu.memory_space<vmem>>, %arg5: memref<16x32xbf16, #tpu.memory_space<vmem>>, %arg6: memref<16x32xbf16, #tpu.memory_space<vmem>>) attributes {dimension_semantics = [#tpu.dimension_semantics<parallel>], iteration_bounds = array<i64: 1>, scalar_prefetch = 0 : i64, scratch_operands = 0 : i64, tpu.core_type = #tpu.core_type<tc>, window_params = [{transform_indices = @transform_0, window_bounds = array<i64: 16, 32>}, {pipeline_mode = #tpu.pipeline_mode<synchronous>, transform_indices = @transform_1, window_bounds = array<i64: 32, 96>}, {pipeline_mode = #tpu.pipeline_mode<synchronous>, transform_indices = @transform_2, window_bounds = array<i64: 1, 96>}, {transform_indices = @transform_3, window_bounds = array<i64: 16, 32>}, {transform_indices = @transform_4, window_bounds = array<i64: 16, 32>}, {transform_indices = @transform_5, window_bounds = array<i64: 16, 32>}]} {
    %c0 = arith.constant 0 : index
    %c0_0 = arith.constant 0 : index
    %0 = vector.load %arg1[%c0, %c0_0] : memref<16x32xf32, #tpu.memory_space<vmem>>, vector<16x32xf32>
    %1 = arith.truncf %0 : vector<16x32xf32> to vector<16x32xbf16>
    %c0_1 = arith.constant 0 : index
    %c0_2 = arith.constant 0 : index
    %2 = vector.load %arg2[%c0_1, %c0_2] : memref<32x96xbf16, #tpu.memory_space<vmem>>, vector<32x96xbf16>
    %cst = arith.constant dense<0.000000e+00> : vector<16x96xf32>
    %3 = tpu.matmul %1, %2, %cst {dimension_numbers = #tpu.dot_dimension_numbers<[1], [0], [0], [1], [0, 0, 1, 1], [], []>} : vector<16x32xbf16>, vector<32x96xbf16>, vector<16x96xf32> -> vector<16x96xf32>
    %c0_3 = arith.constant 0 : index
    %c0_4 = arith.constant 0 : index
    %4 = vector.load %arg3[%c0_3, %c0_4] : memref<1x96xf32, #tpu.memory_space<vmem>>, vector<1x96xf32>
    %5 = vector.broadcast %4 : vector<1x96xf32> to vector<16x96xf32>
    %6 = arith.addf %3, %5 : vector<16x96xf32>
    %7 = vector.extract_strided_slice %6 {offsets = [0, 0], sizes = [16, 32], strides = [1, 1]} : vector<16x96xf32> to vector<16x32xf32>
    %8 = arith.truncf %7 : vector<16x32xf32> to vector<16x32xbf16>
    %c0_5 = arith.constant 0 : index
    %c0_6 = arith.constant 0 : index
    %9 = vector.load %arg4[%c0_5, %c0_6] : memref<16x32xbf16, #tpu.memory_space<vmem>>, vector<16x32xbf16>
    tpu.vector_store %arg4[%c0_5, %c0_6], %8 {strides = array<i32>} : memref<16x32xbf16, #tpu.memory_space<vmem>>, vector<16x32xbf16>,
    %10 = vector.extract_strided_slice %6 {offsets = [0, 32], sizes = [16, 32], strides = [1, 1]} : vector<16x96xf32> to vector<16x32xf32>
    %11 = arith.truncf %10 : vector<16x32xf32> to vector<16x32xbf16>
    %c0_7 = arith.constant 0 : index
    %c0_8 = arith.constant 0 : index
    %12 = vector.load %arg5[%c0_7, %c0_8] : memref<16x32xbf16, #tpu.memory_space<vmem>>, vector<16x32xbf16>
    tpu.vector_store %arg5[%c0_7, %c0_8], %11 {strides = array<i32>} : memref<16x32xbf16, #tpu.memory_space<vmem>>, vector<16x32xbf16>,
    %13 = vector.extract_strided_slice %6 {offsets = [0, 64], sizes = [16, 32], strides = [1, 1]} : vector<16x96xf32> to vector<16x32xf32>
    %14 = arith.truncf %13 : vector<16x32xf32> to vector<16x32xbf16>
    %c0_9 = arith.constant 0 : index
    %c0_10 = arith.constant 0 : index
    %15 = vector.load %arg6[%c0_9, %c0_10] : memref<16x32xbf16, #tpu.memory_space<vmem>>, vector<16x32xbf16>
    tpu.vector_store %arg6[%c0_9, %c0_10], %14 {strides = array<i32>} : memref<16x32xbf16, #tpu.memory_space<vmem>>, vector<16x32xbf16>,
    return
  }
  func.func @transform_0(%arg0: i32) -> (i32, i32) {
    %c0_i32 = arith.constant 0 : i32
    %c0_i32_0 = arith.constant 0 : i32
    return %arg0, %c0_i32 : i32, i32
  }
  func.func @transform_1(%arg0: i32) -> (i32, i32) {
    %c0_i32 = arith.constant 0 : i32
    %c0_i32_0 = arith.constant 0 : i32
    %c0_i32_1 = arith.constant 0 : i32
    return %c0_i32, %c0_i32_0 : i32, i32
  }
  func.func @transform_2(%arg0: i32) -> (i32, i32) {
    %c0_i32 = arith.constant 0 : i32
    %c0_i32_0 = arith.constant 0 : i32
    %c0_i32_1 = arith.constant 0 : i32
    return %c0_i32, %c0_i32_0 : i32, i32
  }
  func.func @transform_3(%arg0: i32) -> (i32, i32) {
    %c0_i32 = arith.constant 0 : i32
    %c0_i32_0 = arith.constant 0 : i32
    return %arg0, %c0_i32 : i32, i32
  }
  func.func @transform_4(%arg0: i32) -> (i32, i32) {
    %c0_i32 = arith.constant 0 : i32
    %c0_i32_0 = arith.constant 0 : i32
    return %arg0, %c0_i32 : i32, i32
  }
  func.func @transform_5(%arg0: i32) -> (i32, i32) {
    %c0_i32 = arith.constant 0 : i32
    %c0_i32_0 = arith.constant 0 : i32
    return %arg0, %c0_i32 : i32, i32
  }
}

</mosaic_0001>

<llo_original>
// kernel: tpu_custom_call.1
$region0: #{tpu_custom_call.1}
  #allocation0 [shape = 'u32[]', space=smem, size = 0x4, offset = 0x4, fixed_abs, tag = 'smem constant byte address 0x4 - core index']
  #allocation1 [shape = 'u32[144,128]{1,0:T(1,128)}', space=vmem, size = 0x12000, scoped, tag = 'internal scratch']
  %s0 = inlined_call_operand.hbm [shape: f32[8,128], index: 0, kind: input, shape index: {}]
  %s1 = inlined_call_operand.hbm [shape: f32[8,128], index: 1, kind: input, shape index: {}]
  %s2 = inlined_call_operand.hbm [shape: f32[8,128], index: 2, kind: output, shape index: {}]
  %s3 = sld [smem:[#allocation0]]
  $region26: #{tpu_custom_call.1} parent=0
    _
  %s5 = ssub.s32 1, %s3
  %s6 = scalar_select 0, %s5, %s3
  $region1: #{tpu_custom_call.1} parent=0
    #allocation2 [shape = 'u8[4096]{0}', space=vmem, size = 0x1000, scoped, tag = 'input window, operand 0, single buffered']
    #allocation3 [shape = 's32[1]{0}', space=sflag, size = 0x4, scoped, tag = 'scoped memory for tpu_custom_call.1']
    #allocation4 [shape = 's32[1]{0}', space=sflag, size = 0x4, scoped, tag = 'scoped memory for tpu_custom_call.1']
    #allocation5 [shape = 'u8[4096]{0}', space=vmem, size = 0x1000, scoped, tag = 'input window, operand 1, single buffered']
    #allocation6 [shape = 's32[1]{0}', space=sflag, size = 0x4, scoped, tag = 'scoped memory for tpu_custom_call.1']
    #allocation7 [shape = 'u8[4096]{0}', space=vmem, size = 0x1000, scoped, tag = 'output window, operand 0, single buffered']
    %7 = vsyncpa [#allocation3], 0
    %8 = vsyncpa [#allocation6], 0
    %9 = vsyncpa [#allocation4], 0
    // Predicated region
    $region2: #{tpu_custom_call.1} parent=1 // pred_check
      _
    $region3: #{tpu_custom_call.1} parent=1 // pred_check_branch
      %11 = sbr.rel (0) target = $region5
    $region4: #{tpu_custom_call.1} parent=1 // pred_region
      %s13 = ssub.s32 128, 128
      %14 = vsyncadd [#allocation3], %s13
      %s16 = sshll.u32 [#allocation2], 4
      %s17 = int_to_ptr.vmem [resolvable:$true] %s16
      %19 = dma.hbm_to_vmem [thread:$0]  %s0, 128, %s17, [#allocation3]
    $region5: #{tpu_custom_call.1} parent=1 // pred_fallthru
      _
    // Predicated region
    $region6: #{tpu_custom_call.1} parent=1 // pred_check
      _
    $region7: #{tpu_custom_call.1} parent=1 // pred_check_branch
      %21 = sbr.rel (0) target = $region9
    $region8: #{tpu_custom_call.1} parent=1 // pred_region
      %s23 = ssub.s32 128, 128
      %24 = vsyncadd [#allocation6], %s23
      %s26 = sshll.u32 [#allocation5], 4
      %s27 = int_to_ptr.vmem [resolvable:$true] %s26
      %29 = dma.hbm_to_vmem [thread:$0]  %s1, 128, %s27, [#allocation6]
    $region9: #{tpu_custom_call.1} parent=1 // pred_fallthru
      _
    // Predicated region
    $region10: #{tpu_custom_call.1} parent=1 // pred_check
      _
    $region11: #{tpu_custom_call.1} parent=1 // pred_check_branch
      %31 = sbr.rel (0) target = $region13
    $region12: #{tpu_custom_call.1} parent=1 // pred_region
      %32 = dma.done [#allocation3], 128
    $region13: #{tpu_custom_call.1} parent=1 // pred_fallthru
      _
    // Predicated region
    $region14: #{tpu_custom_call.1} parent=1 // pred_check
      _
    $region15: #{tpu_custom_call.1} parent=1 // pred_check_branch
      %34 = sbr.rel (0) target = $region17
    $region16: #{tpu_custom_call.1} parent=1 // pred_region
      %35 = dma.done [#allocation6], 128
    $region17: #{tpu_custom_call.1} parent=1 // pred_fallthru
      _
    %v36 = vld [vmem:[#allocation2] sm:$0xff]
    %v37 = vld [vmem:[#allocation5] sm:$0xff]
    %v38 = vadd.f32 %v36, %v37
    %39 = vst [vmem:[#allocation7] sm:$0xff] %v38
    // Predicated region
    $region18: #{tpu_custom_call.1} parent=1 // pred_check
      _
    $region19: #{tpu_custom_call.1} parent=1 // pred_check_branch
      %41 = sbr.rel (0) target = $region21
    $region20: #{tpu_custom_call.1} parent=1 // pred_region
      %s43 = ssub.s32 128, 128
      %44 = vsyncadd [#allocation4], %s43
      %s46 = sshll.u32 [#allocation7], 4
      %s47 = int_to_ptr.vmem [resolvable:$true] %s46
      %49 = dma.vmem_to_hbm [thread:$0]  %s47, 128, %s2, [#allocation4]
    $region21: #{tpu_custom_call.1} parent=1 // pred_fallthru
      _
    // Predicated region
    $region22: #{tpu_custom_call.1} parent=1 // pred_check
      _
    $region23: #{tpu_custom_call.1} parent=1 // pred_check_branch
      %51 = sbr.rel (0) target = $region25
    $region24: #{tpu_custom_call.1} parent=1 // pred_region
      %52 = dma.done [#allocation4], 128
    $region25: #{tpu_custom_call.1} parent=1 // pred_fallthru
      _
    %53 = vsyncpa [#allocation3], 1
    %54 = vsyncpa [#allocation6], 1
    %55 = vsyncpa [#allocation4], 1

// kernel: tpu_custom_call.1
$region0: #{tpu_custom_call.1}
  #allocation0 [shape = 'u32[]', space=smem, size = 0x4, offset = 0x4, fixed_abs, tag = 'smem constant byte address 0x4 - core index']
  #allocation1 [shape = 'u32[144,128]{1,0:T(1,128)}', space=vmem, size = 0x12000, scoped, tag = 'internal scratch']
  %s0 = inlined_call_operand.hbm [shape: f32[16,32], index: 0, kind: input, shape index: {}]
  %s1 = inlined_call_operand.hbm [shape: bf16[32,96], index: 1, kind: input, shape index: {}]
  %s2 = inlined_call_operand.vmem [shape: f32[1,96], index: 2, kind: input, shape index: {}]
  %s3 = inlined_call_operand.hbm [shape: bf16[16,32], index: 3, kind: output, shape index: {0}]
  %s4 = inlined_call_operand.hbm [shape: bf16[16,32], index: 4, kind: output, shape index: {1}]
  %s5 = inlined_call_operand.hbm [shape: bf16[16,32], index: 5, kind: output, shape index: {2}]
  %6 = xla_tuple %s3, %s4, %s5
  %s7 = sld [smem:[#allocation0]]
  $region46: #{tpu_custom_call.1} parent=0
    _
  %s9 = ssub.s32 1, %s7
  %s10 = scalar_select 0, %s9, %s7
  $region1: #{tpu_custom_call.1} parent=0
    #allocation2 [shape = 'u8[8192]{0}', space=vmem, size = 0x2000, scoped, tag = 'input window, operand 0, single buffered']
    #allocation3 [shape = 's32[1]{0}', space=sflag, size = 0x4, scoped, tag = 'scoped memory for tpu_custom_call.1']
    #allocation4 [shape = 's32[1]{0}', space=sflag, size = 0x4, scoped, tag = 'scoped memory for tpu_custom_call.1']
    #allocation5 [shape = 'u8[8192]{0}', space=vmem, size = 0x2000, scoped, tag = 'input window, operand 1, single buffered']
    #allocation6 [shape = 's32[1]{0}', space=sflag, size = 0x4, scoped, tag = 'scoped memory for tpu_custom_call.1']
    #allocation7 [shape = 'u8[4096]{0}', space=vmem, size = 0x1000, scoped, tag = 'output window, operand 0, single buffered']
    #allocation8 [shape = 'u8[4096]{0}', space=vmem, size = 0x1000, scoped, tag = 'output window, operand 1, single buffered']
    #allocation9 [shape = 's32[1]{0}', space=sflag, size = 0x4, scoped, tag = 'scoped memory for tpu_custom_call.1']
    #allocation10 [shape = 'u8[4096]{0}', space=vmem, size = 0x1000, scoped, tag = 'output window, operand 2, single buffered']
    %11 = vsyncpa [#allocation3], 0
    %12 = vsyncpa [#allocation6], 0
    %13 = vsyncpa [#allocation4], 0
    %14 = vsyncpa [#allocation9], 0
    // Predicated region
    $region2: #{tpu_custom_call.1} parent=1 // pred_check
      _
    $region3: #{tpu_custom_call.1} parent=1 // pred_check_branch
      %16 = sbr.rel (0) target = $region5
    $region4: #{tpu_custom_call.1} parent=1 // pred_region
      %s18 = ssub.s32 256, 256
      %19 = vsyncadd [#allocation3], %s18
      %s20 = sshll.u32 [#allocation2], 4
      %s21 = int_to_ptr.vmem [resolvable:$true] %s20
      %26 = dma.hbm_to_vmem [thread:$0]  %s0, 256, %s21, [#allocation3], 128, 128, 8
    $region5: #{tpu_custom_call.1} parent=1 // pred_fallthru
      _
    // Predicated region
    $region6: #{tpu_custom_call.1} parent=1 // pred_check
      _
    $region7: #{tpu_custom_call.1} parent=1 // pred_check_branch
      %28 = sbr.rel (0) target = $region9
    $region8: #{tpu_custom_call.1} parent=1 // pred_region
      %s30 = ssub.s32 256, 256
      %31 = vsyncadd [#allocation6], %s30
      %s32 = sshll.u32 [#allocation5], 4
      %s33 = int_to_ptr.vmem [resolvable:$true] %s32
      %38 = dma.hbm_to_vmem [thread:$0]  %s1, 256, %s33, [#allocation6], 64, 64, 4
    $region9: #{tpu_custom_call.1} parent=1 // pred_fallthru
      _
    // Predicated region
    $region10: #{tpu_custom_call.1} parent=1 // pred_check
      _
    $region11: #{tpu_custom_call.1} parent=1 // pred_check_branch
      %40 = sbr.rel (0) target = $region13
    $region12: #{tpu_custom_call.1} parent=1 // pred_region
      _
    $region13: #{tpu_custom_call.1} parent=1 // pred_fallthru
      _
    // Predicated region
    $region14: #{tpu_custom_call.1} parent=1 // pred_check
      _
    $region15: #{tpu_custom_call.1} parent=1 // pred_check_branch
      %42 = sbr.rel (0) target = $region17
    $region16: #{tpu_custom_call.1} parent=1 // pred_region
      %43 = dma.done [#allocation3], 256
    $region17: #{tpu_custom_call.1} parent=1 // pred_fallthru
      _
    // Predicated region
    $region18: #{tpu_custom_call.1} parent=1 // pred_check
      _
    $region19: #{tpu_custom_call.1} parent=1 // pred_check_branch
      %45 = sbr.rel (0) target = $region21
    $region20: #{tpu_custom_call.1} parent=1 // pred_region
      %46 = dma.done [#allocation6], 256
    $region21: #{tpu_custom_call.1} parent=1 // pred_fallthru
      _
    %v48 = vld [vmem:[#allocation2] sm:$0xff]
    %v49 = vld [vmem:[#allocation2 + $0x8] sm:$0xff]
    %v50 = vpack.c.bf16 %v49, %v48
    %v51 = vld [vmem:[#allocation5] sm:$0xf]
    %v52 = vld [vmem:[#allocation5 + $0x4] sm:$0xf]
    %v53 = vld [vmem:[#allocation5 + $0x8] sm:$0xf]
    %v54 = vld [vmem:[#allocation5 + $0xc] sm:$0xf]
    %v55 = vld [vmem:[%s2] sm:$0x1]
    %v57 = vlaneseq
    %v58 = vshrl.u32 %v57, 7
    %v59 = vsub.s32 0, %v58
    %v60 = vrot.slane %v55, %v59
    %v66 = vunpack.c.l.b16 %v51
    %v67 = vunpack.c.l.b16 %v52
    %v68 = vunpack.c.l.b16 %v53
    %v69 = vunpack.c.l.b16 %v54
    %v70 = vpack.c.b16 %v67, %v66
    %v71 = vpack.c.b16 %v69, %v68
    %vm74 = vcmask 261120
    %v76 = vsel %vm74, %v50, 0
    %78 = vmatprep.subr.bf16.mxu0 0
    %79 = vmatpush1.bf16.msra.mxu0 %v70
    %80 = vmatprep.subr.bf16.mxu0 0
    %81 = vmatpush1.bf16.msra.mxu0 %v71
    %82 = vmatprep.subr.bf16.mxu0 0
    %83 = vmatpush1.bf16.msra.mxu0 0
    %84 = vmatprep.subr.bf16.mxu0 0
    %85 = vmatpush1.bf16.msra.mxu0 0
    %86 = vmatprep.subr.bf16.mxu0 0
    %87 = vmatpush1.bf16.msra.mxu0 0
    %88 = vmatprep.subr.bf16.mxu0 0
    %89 = vmatpush1.bf16.msra.mxu0 0
    %90 = vmatprep.subr.bf16.mxu0 0
    %91 = vmatpush1.bf16.msra.mxu0 0
    %92 = vmatprep.subr.bf16.mxu0 0
    %93 = vmatpush1.bf16.msra.mxu0 0
    %94 = vmatprep.subr.bf16.mxu0 0
    %95 = vmatpush1.bf16.msra.mxu0 0
    %96 = vmatprep.subr.bf16.mxu0 0
    %97 = vmatpush1.bf16.msra.mxu0 0
    %98 = vmatprep.subr.bf16.mxu0 0
    %99 = vmatpush1.bf16.msra.mxu0 0
    %100 = vmatprep.subr.bf16.mxu0 0
    %101 = vmatpush1.bf16.msra.mxu0 0
    %102 = vmatprep.subr.bf16.mxu0 0
    %103 = vmatpush1.bf16.msra.mxu0 0
    %104 = vmatprep.subr.bf16.mxu0 0
    %105 = vmatpush1.bf16.msra.mxu0 0
    %106 = vmatprep.subr.bf16.mxu0 0
    %107 = vmatpush1.bf16.msra.mxu0 0
    %108 = vmatprep.subr.bf16.mxu0 0
    %109 = vmatpush1.bf16.msra.mxu0 0
    %110 = vmatprep.mubr.bf16.mxu0 0
    %111 = vmatmul.mubr.bf16.gmra.mrb[0].mxu0 %v76
    %v112 = vpop.f32.mrb[0].mxu0
    %v113 = vadd.f32 %v60, %v112
    %v114 = vpop.f32.mrb[0].mxu0
    %v115 = vpop.f32.mrb[0].mxu0
    %v116 = vadd.f32 %v60, %v115
    %v117 = vpop.f32.mrb[0].mxu0
    %118 = vdwg.mxu0
    %v119 = vpack.c.bf16 %v116, %v113
    %v121 = vunpack.c.l.b16 %v119
    %v122 = vunpack.c.h.b16 %v119
    %v123 = vpack.c.b16 %v121, %v121
    %v124 = vpack.c.b16 %v122, %v122
    %vm127 = vcmask 257024
    %128 = vst.msk [vmem:[#allocation7] sm:$0xf] %vm127, %v123
    %129 = vst.msk [vmem:[#allocation7 + $0x4] sm:$0xf] %vm127, %v124
    %130 = vrot.lane.b32.xlu0 %v123, 96
    %v131 = vpop.permute.xlu0 %130
    %132 = vrot.lane.b32.xlu0 %v124, 96
    %v133 = vpop.permute.xlu0 %132
    %136 = vst.msk [vmem:[#allocation8] sm:$0xf] %vm127, %v131
    %137 = vst.msk [vmem:[#allocation8 + $0x4] sm:$0xf] %vm127, %v133
    %138 = vrot.lane.b32.xlu0 %v123, 64
    %v139 = vpop.permute.xlu0 %138
    %140 = vrot.lane.b32.xlu0 %v124, 64
    %v141 = vpop.permute.xlu0 %140
    %144 = vst.msk [vmem:[#allocation10] sm:$0xf] %vm127, %v139
    %145 = vst.msk [vmem:[#allocation10 + $0x4] sm:$0xf] %vm127, %v141
    // Predicated region
    $region22: #{tpu_custom_call.1} parent=1 // pred_check
      _
    $region23: #{tpu_custom_call.1} parent=1 // pred_check_branch
      %147 = sbr.rel (0) target = $region25
    $region24: #{tpu_custom_call.1} parent=1 // pred_region
      %s149 = ssub.s32 128, 128
      %150 = vsyncadd [#allocation4], %s149
      %s151 = sshll.u32 [#allocation7], 4
      %s152 = int_to_ptr.vmem [resolvable:$true] %s151
      %157 = dma.vmem_to_hbm [thread:$0]  %s152, 128, %s3, [#allocation4], 64, 64, 4
    $region25: #{tpu_custom_call.1} parent=1 // pred_fallthru
      _
    // Predicated region
    $region26: #{tpu_custom_call.1} parent=1 // pred_check
      _
    $region27: #{tpu_custom_call.1} parent=1 // pred_check_branch
      %159 = sbr.rel (0) target = $region29
    $region28: #{tpu_custom_call.1} parent=1 // pred_region
      %s161 = ssub.s32 128, 128
      %162 = vsyncadd [#allocation9], %s161
      %s163 = sshll.u32 [#allocation8], 4
      %s164 = int_to_ptr.vmem [resolvable:$true] %s163
      %169 = dma.vmem_to_hbm [thread:$0]  %s164, 128, %s4, [#allocation9], 64, 64, 4
    $region29: #{tpu_custom_call.1} parent=1 // pred_fallthru
      _
    // Predicated region
    $region30: #{tpu_custom_call.1} parent=1 // pred_check
      _
    $region31: #{tpu_custom_call.1} parent=1 // pred_check_branch
      %171 = sbr.rel (0) target = $region33
    $region32: #{tpu_custom_call.1} parent=1 // pred_region
      %s173 = ssub.s32 128, 128
      %174 = vsyncadd [#allocation9], %s173
      %s175 = sshll.u32 [#allocation10], 4
      %s176 = int_to_ptr.vmem [resolvable:$true] %s175
      %181 = dma.vmem_to_hbm [thread:$0]  %s176, 128, %s5, [#allocation9], 64, 64, 4
    $region33: #{tpu_custom_call.1} parent=1 // pred_fallthru
      _
    // Predicated region
    $region34: #{tpu_custom_call.1} parent=1 // pred_check
      _
    $region35: #{tpu_custom_call.1} parent=1 // pred_check_branch
      %183 = sbr.rel (0) target = $region37
    $region36: #{tpu_custom_call.1} parent=1 // pred_region
      %184 = dma.done [#allocation4], 128
    $region37: #{tpu_custom_call.1} parent=1 // pred_fallthru
      _
    // Predicated region
    $region38: #{tpu_custom_call.1} parent=1 // pred_check
      _
    $region39: #{tpu_custom_call.1} parent=1 // pred_check_branch
      %186 = sbr.rel (0) target = $region41
    $region40: #{tpu_custom_call.1} parent=1 // pred_region
      %187 = dma.done [#allocation9], 128
    $region41: #{tpu_custom_call.1} parent=1 // pred_fallthru
      _
    // Predicated region
    $region42: #{tpu_custom_call.1} parent=1 // pred_check
      _
    $region43: #{tpu_custom_call.1} parent=1 // pred_check_branch
      %189 = sbr.rel (0) target = $region45
    $region44: #{tpu_custom_call.1} parent=1 // pred_region
      %190 = dma.done [#allocation9], 128
    $region45: #{tpu_custom_call.1} parent=1 // pred_fallthru
      _
    %191 = vsyncpa [#allocation3], 1
    %192 = vsyncpa [#allocation6], 1
    %193 = vsyncpa [#allocation4], 1
    %194 = vsyncpa [#allocation9], 1

</llo_original>
